<compile_context>
chip_gen: v5e
topology: v5e:2x2
jax: 0.10.0
libtpu: 0.0.40
codegen_flags: <defaults>
</compile_context>

<pallas_src>
import functools
import numpy as np
import jax
import jax.numpy as jnp
from jax.experimental import pallas as pl
from jax.experimental.pallas import tpu as pltpu

GROUPS = 4
KSIZE = 3


def _round_up(x, m):
    return ((x + m - 1) // m) * m


def _residual_shuffle_kernel(xp_ref, res_ref, w1_ref, w23_ref, o_ref, *, Wp, K):
    # xp_ref : (1, C, Sp)  zero-padded input, flattened (Hp*Wp rounded up to 128), f32
    # res_ref: (1, C, L)   residual in the output frame (row stride Wp), f32
    # w1_ref : (C, C)      Block1 grouped-1x1 weights, channel-major (C_out, C_in), bf16
    # w23_ref: (C, K*K*C)  Block2 taps with ChannelShuffle + Block3 folded in, bf16
    # o_ref  : (1, C, L)
    L = o_ref.shape[2]

    x = xp_ref[0].astype(jnp.bfloat16)                                # (C, Sp)

    # Block1: grouped 1x1 conv + ReLU (channel-major: y = W1 @ x). The zero padding
    # stays zero (no bias), so the padded border is valid for the 3x3 taps below.
    y1 = jnp.maximum(
        jnp.dot(w1_ref[...], x, preferred_element_type=jnp.float32), 0.0)
    y1 = y1.astype(jnp.bfloat16)                                      # (C, Sp)

    # ChannelShuffle + Block2 (3x3, SAME, stride 1) + Block3 (1x1): shuffle and Block3
    # are folded into w23; the 3x3 conv is 9 lane-shifted views of y1 stacked along the
    # contraction axis -> a single (C, 9C) @ (9C, L) MXU matmul.
    taps = [y1[:, kh * Wp + kw: kh * Wp + kw + L]
            for kh in range(K) for kw in range(K)]
    z = jnp.concatenate(taps, axis=0)                                 # (K*K*C, L)
    y3 = jnp.dot(w23_ref[...], z, preferred_element_type=jnp.float32)  # (C, L)

    # Residual add + ReLU (f32 elementwise).
    o_ref[0] = jnp.maximum(y3 + res_ref[0], 0.0).astype(o_ref.dtype)


def residual_shuffle_pallas(x_nchw, w1_cm, w23, *, ksize=KSIZE):
    """x_nchw: (N, C, H, W) f32; w1_cm: (C, C) bf16; w23: (C, K*K*C) bf16."""
    N, C, H, W = x_nchw.shape
    Hp = H + 2                               # 1-pixel zero border top/bottom
    Wp = _round_up(W + 2, 8)                 # 1 left zero col + >=1 right zero col
    L = H * Wp                               # flattened output frame (row stride Wp)
    Sp = _round_up(Hp * Wp, 128)             # flattened padded input frame, lane-dense

    # Padded input, flattened to (N, C, Sp). Output position q = i*Wp + j reads
    # xp_flat[q + kh*Wp + kw] == padded(i+kh, j+kw): standard SAME-padding 3x3 window.
    xp = jnp.pad(x_nchw, ((0, 0), (0, 0), (1, 1), (1, Wp - W - 1)))
    xp_f = jnp.pad(xp.reshape(N, C, Hp * Wp),
                   ((0, 0), (0, 0), (0, Sp - Hp * Wp)))
    # Residual aligned to the output frame (zeros in the W..Wp-1 junk columns).
    res = jnp.pad(x_nchw, ((0, 0), (0, 0), (0, 0), (0, Wp - W))).reshape(N, C, L)

    kernel = functools.partial(_residual_shuffle_kernel, Wp=Wp, K=ksize)
    out_flat = pl.pallas_call(
        kernel,
        out_shape=jax.ShapeDtypeStruct((N, C, L), x_nchw.dtype),
        grid=(N,),
        in_specs=[
            pl.BlockSpec((1, C, Sp), lambda n: (n, 0, 0)),
            pl.BlockSpec((1, C, L), lambda n: (n, 0, 0)),
            pl.BlockSpec((C, C), lambda n: (0, 0)),
            pl.BlockSpec((C, ksize * ksize * C), lambda n: (0, 0)),
        ],
        out_specs=pl.BlockSpec((1, C, L), lambda n: (n, 0, 0)),
        compiler_params=pltpu.CompilerParams(
            dimension_semantics=("parallel",)),     # v7x: batch split across both TCs
    )(xp_f, res, w1_cm, w23)

    # Drop the junk columns of the padded output frame (layout plumbing only).
    return out_flat.reshape(N, C, H, Wp)[:, :, :, :W]


# ---------- parameter plumbing (plain numpy glue) ----------

def _shuffle_perm(channels, groups):
    # ChannelShuffle: out channel (i*groups + g) <- in channel (g*cpg + i)
    return np.arange(channels).reshape(groups, channels // groups).T.reshape(-1)


def _blockdiag(w_oihw, groups, kh, kw):
    # torch OIHW grouped weight (C_out, C_in_per_group, K, K), tap (kh, kw)
    # -> dense (C_in, C_out) block-diagonal matrix for y = x @ W
    c_out, c_in_g = w_oihw.shape[0], w_oihw.shape[1]
    cg_out = c_out // groups
    c_in = c_in_g * groups
    bd = np.zeros((c_in, c_out), np.float32)
    for g in range(groups):
        blk = w_oihw[g * cg_out:(g + 1) * cg_out, :, kh, kw]    # (cg_out, c_in_g)
        bd[g * c_in_g:(g + 1) * c_in_g, g * cg_out:(g + 1) * cg_out] = blk.T
    return bd


def prepare_weights(w1, w2, w3, groups):
    """Fold ChannelShuffle + Block3 into Block2 taps; channel-major, bf16."""
    w1 = np.asarray(w1, np.float32)
    w2 = np.asarray(w2, np.float32)
    w3 = np.asarray(w3, np.float32)
    C = w1.shape[0]
    k = w2.shape[2]
    perm = _shuffle_perm(C, groups)
    w1_cm = _blockdiag(w1, groups, 0, 0).T                  # (C_out, C_in) channel-major
    w3_bd = _blockdiag(w3, groups, 0, 0)                    # (C_mid, C_out)
    w23 = np.zeros((C, k * k * C), np.float32)
    t = 0
    for kh in range(k):
        for kw in range(k):
            bd = _blockdiag(w2, groups, kh, kw)             # (C_in, C_mid)
            eff = np.zeros_like(bd)
            eff[perm] = bd                                  # fold ChannelShuffle
            w23[:, t * C:(t + 1) * C] = (eff @ w3_bd).T     # fold Block3, channel-major
            t += 1
    return (jnp.asarray(w1_cm, jnp.bfloat16),
            jnp.asarray(w23, jnp.bfloat16))


# ---------- pure-JAX reference (for verification) ----------

def _gconv_ref(x_nchw, w_oihw, groups, padding):
    return jax.lax.conv_general_dilated(
        x_nchw, jnp.asarray(w_oihw), window_strides=(1, 1), padding=padding,
        dimension_numbers=('NCHW', 'OIHW', 'NCHW'),
        feature_group_count=groups)


def _channel_shuffle_nchw(x, groups):
    n, c, h, w = x.shape
    return x.reshape(n, groups, c // groups, h, w).swapaxes(1, 2).reshape(n, c, h, w)


def residual_shuffle_ref(x_nchw, w1, w2, w3, groups):
    y1 = jax.nn.relu(_gconv_ref(x_nchw, w1, groups, 'VALID'))
    z = _channel_shuffle_nchw(y1, groups)
    y2 = _gconv_ref(z, w2, groups, 'SAME')
    y3 = _gconv_ref(y2, w3, groups, 'VALID')
    return jax.nn.relu(y3 + x_nchw)


if __name__ == "__main__":
    # Module config: tensor_size=(N, C, H, W), filter_size=3, out_channels=C,
    # strides=1, groups=4 -> residue path is the identity, DropOut(p=0) is identity.
    N, C, H, W = 2, 16, 16, 16
    cg = C // GROUPS

    key = jax.random.PRNGKey(0)
    kx, k1, k2, k3 = jax.random.split(key, 4)
    x = jax.random.normal(kx, (N, C, H, W), jnp.float32)                 # PyTorch NCHW
    w1 = 0.2 * jax.random.normal(k1, (C, cg, 1, 1), jnp.float32)         # Block1 grouped 1x1
    w2 = 0.2 * jax.random.normal(k2, (C, cg, KSIZE, KSIZE), jnp.float32)  # Block2 grouped 3x3
    w3 = 0.2 * jax.random.normal(k3, (C, cg, 1, 1), jnp.float32)         # Block3 grouped 1x1

    w1_cm, w23 = prepare_weights(np.asarray(w1), np.asarray(w2),
                                 np.asarray(w3), GROUPS)

    out = residual_shuffle_pallas(x, w1_cm, w23)
    out = jax.block_until_ready(out)

    ref = residual_shuffle_ref(x, np.asarray(w1), np.asarray(w2),
                               np.asarray(w3), GROUPS)
    np.testing.assert_allclose(np.asarray(out), np.asarray(ref),
                               rtol=2e-2, atol=2e-2)
    print("KERNEL_OK")
</pallas_src>

<mosaic_0001>
module attributes {stable_mosaic.version = 11 : i64} {
  func.func @_residual_shuffle_kernel(%arg0: i32, %arg1: memref<1x16x512xf32, #tpu.memory_space<vmem>>, %arg2: memref<1x16x384xf32, #tpu.memory_space<vmem>>, %arg3: memref<16x16xbf16, #tpu.memory_space<vmem>>, %arg4: memref<16x144xbf16, #tpu.memory_space<vmem>>, %arg5: memref<1x16x384xf32, #tpu.memory_space<vmem>>) attributes {dimension_semantics = [#tpu.dimension_semantics<parallel>], iteration_bounds = array<i64: 2>, scalar_prefetch = 0 : i64, scratch_operands = 0 : i64, tpu.core_type = #tpu.core_type<tc>, window_params = [{transform_indices = @transform_0, window_bounds = array<i64: 1, 16, 512>}, {transform_indices = @transform_1, window_bounds = array<i64: 1, 16, 384>}, {pipeline_mode = #tpu.pipeline_mode<synchronous>, transform_indices = @transform_2, window_bounds = array<i64: 16, 16>}, {pipeline_mode = #tpu.pipeline_mode<synchronous>, transform_indices = @transform_3, window_bounds = array<i64: 16, 144>}, {transform_indices = @transform_4, window_bounds = array<i64: 1, 16, 384>}]} {
    %c0 = arith.constant 0 : index
    %c0_0 = arith.constant 0 : index
    %c0_1 = arith.constant 0 : index
    %0 = vector.load %arg1[%c0, %c0_0, %c0_1] : memref<1x16x512xf32, #tpu.memory_space<vmem>>, vector<1x16x512xf32>
    %1 = vector.shape_cast %0 : vector<1x16x512xf32> to vector<16x512xf32>
    %2 = arith.truncf %1 : vector<16x512xf32> to vector<16x512xbf16>
    %c0_2 = arith.constant 0 : index
    %c0_3 = arith.constant 0 : index
    %3 = vector.load %arg3[%c0_2, %c0_3] : memref<16x16xbf16, #tpu.memory_space<vmem>>, vector<16x16xbf16>
    %cst = arith.constant dense<0.000000e+00> : vector<16x512xf32>
    %4 = tpu.matmul %3, %2, %cst {dimension_numbers = #tpu.dot_dimension_numbers<[1], [0], [0], [1], [0, 0, 1, 1], [], []>} : vector<16x16xbf16>, vector<16x512xbf16>, vector<16x512xf32> -> vector<16x512xf32>
    %cst_4 = arith.constant 0.000000e+00 : f32
    %5 = vector.broadcast %cst_4 : f32 to vector<16x512xf32>
    %6 = arith.maximumf %4, %5 : vector<16x512xf32>
    %7 = arith.truncf %6 : vector<16x512xf32> to vector<16x512xbf16>
    %8 = vector.extract_strided_slice %7 {offsets = [0, 0], sizes = [16, 384], strides = [1, 1]} : vector<16x512xbf16> to vector<16x384xbf16>
    %9 = vector.extract_strided_slice %7 {offsets = [0, 1], sizes = [16, 384], strides = [1, 1]} : vector<16x512xbf16> to vector<16x384xbf16>
    %10 = vector.extract_strided_slice %7 {offsets = [0, 2], sizes = [16, 384], strides = [1, 1]} : vector<16x512xbf16> to vector<16x384xbf16>
    %11 = vector.extract_strided_slice %7 {offsets = [0, 24], sizes = [16, 384], strides = [1, 1]} : vector<16x512xbf16> to vector<16x384xbf16>
    %12 = vector.extract_strided_slice %7 {offsets = [0, 25], sizes = [16, 384], strides = [1, 1]} : vector<16x512xbf16> to vector<16x384xbf16>
    %13 = vector.extract_strided_slice %7 {offsets = [0, 26], sizes = [16, 384], strides = [1, 1]} : vector<16x512xbf16> to vector<16x384xbf16>
    %14 = vector.extract_strided_slice %7 {offsets = [0, 48], sizes = [16, 384], strides = [1, 1]} : vector<16x512xbf16> to vector<16x384xbf16>
    %15 = vector.extract_strided_slice %7 {offsets = [0, 49], sizes = [16, 384], strides = [1, 1]} : vector<16x512xbf16> to vector<16x384xbf16>
    %16 = vector.extract_strided_slice %7 {offsets = [0, 50], sizes = [16, 384], strides = [1, 1]} : vector<16x512xbf16> to vector<16x384xbf16>
    %17 = tpu.concatenate %8, %9, %10, %11, %12, %13, %14, %15, %16 in 0 : vector<16x384xbf16>, vector<16x384xbf16>, vector<16x384xbf16>, vector<16x384xbf16>, vector<16x384xbf16>, vector<16x384xbf16>, vector<16x384xbf16>, vector<16x384xbf16>, vector<16x384xbf16> -> vector<144x384xbf16>
    %c0_5 = arith.constant 0 : index
    %c0_6 = arith.constant 0 : index
    %18 = vector.load %arg4[%c0_5, %c0_6] : memref<16x144xbf16, #tpu.memory_space<vmem>>, vector<16x144xbf16>
    %cst_7 = arith.constant dense<0.000000e+00> : vector<16x384xf32>
    %19 = tpu.matmul %18, %17, %cst_7 {dimension_numbers = #tpu.dot_dimension_numbers<[1], [0], [0], [1], [0, 0, 1, 1], [], []>} : vector<16x144xbf16>, vector<144x384xbf16>, vector<16x384xf32> -> vector<16x384xf32>
    %c0_8 = arith.constant 0 : index
    %c0_9 = arith.constant 0 : index
    %c0_10 = arith.constant 0 : index
    %20 = vector.load %arg2[%c0_8, %c0_9, %c0_10] : memref<1x16x384xf32, #tpu.memory_space<vmem>>, vector<1x16x384xf32>
    %21 = vector.shape_cast %20 : vector<1x16x384xf32> to vector<16x384xf32>
    %22 = arith.addf %19, %21 : vector<16x384xf32>
    %cst_11 = arith.constant 0.000000e+00 : f32
    %23 = vector.broadcast %cst_11 : f32 to vector<16x384xf32>
    %24 = arith.maximumf %22, %23 : vector<16x384xf32>
    %c0_12 = arith.constant 0 : index
    %c0_13 = arith.constant 0 : index
    %c0_14 = arith.constant 0 : index
    %25 = vector.load %arg5[%c0_12, %c0_13, %c0_14] : memref<1x16x384xf32, #tpu.memory_space<vmem>>, vector<1x16x384xf32>
    %26 = vector.shape_cast %25 : vector<1x16x384xf32> to vector<16x384xf32>
    %27 = vector.shape_cast %24 : vector<16x384xf32> to vector<1x16x384xf32>
    tpu.vector_store %arg5[%c0_12, %c0_13, %c0_14], %27 {strides = array<i32>} : memref<1x16x384xf32, #tpu.memory_space<vmem>>, vector<1x16x384xf32>,
    return
  }
  func.func @transform_0(%arg0: i32) -> (i32, i32, i32) {
    %c0_i32 = arith.constant 0 : i32
    %c0_i32_0 = arith.constant 0 : i32
    %c0_i32_1 = arith.constant 0 : i32
    return %arg0, %c0_i32, %c0_i32_0 : i32, i32, i32
  }
  func.func @transform_1(%arg0: i32) -> (i32, i32, i32) {
    %c0_i32 = arith.constant 0 : i32
    %c0_i32_0 = arith.constant 0 : i32
    %c0_i32_1 = arith.constant 0 : i32
    return %arg0, %c0_i32, %c0_i32_0 : i32, i32, i32
  }
  func.func @transform_2(%arg0: i32) -> (i32, i32) {
    %c0_i32 = arith.constant 0 : i32
    %c0_i32_0 = arith.constant 0 : i32
    %c0_i32_1 = arith.constant 0 : i32
    return %c0_i32, %c0_i32_0 : i32, i32
  }
  func.func @transform_3(%arg0: i32) -> (i32, i32) {
    %c0_i32 = arith.constant 0 : i32
    %c0_i32_0 = arith.constant 0 : i32
    %c0_i32_1 = arith.constant 0 : i32
    return %c0_i32, %c0_i32_0 : i32, i32
  }
  func.func @transform_4(%arg0: i32) -> (i32, i32, i32) {
    %c0_i32 = arith.constant 0 : i32
    %c0_i32_0 = arith.constant 0 : i32
    %c0_i32_1 = arith.constant 0 : i32
    return %arg0, %c0_i32, %c0_i32_0 : i32, i32, i32
  }
}

</mosaic_0001>

<llo_original>
// kernel: tpu_custom_call.1
$region0: #{tpu_custom_call.1}
  #allocation0 [shape = 'u32[]', space=smem, size = 0x4, offset = 0x4, fixed_abs, tag = 'smem constant byte address 0x4 - core index']
  #allocation1 [shape = 'u32[72,128]{1,0:T(1,128)}', space=vmem, size = 0x9000, scoped, tag = 'internal scratch']
  %s0 = inlined_call_operand.hbm [shape: f32[2,16,512], index: 0, kind: input, shape index: {}]
  %s1 = inlined_call_operand.hbm [shape: f32[2,16,384], index: 1, kind: input, shape index: {}]
  %s2 = inlined_call_operand.hbm [shape: bf16[16,16], index: 2, kind: input, shape index: {}]
  %s3 = inlined_call_operand.hbm [shape: bf16[16,144], index: 3, kind: input, shape index: {}]
  %s4 = inlined_call_operand.hbm [shape: f32[2,16,384], index: 4, kind: output, shape index: {}]
  %s5 = sld [smem:[#allocation0]]
  $region65: #{tpu_custom_call.1} parent=0
    _
  %s7 = ssub.s32 1, %s5
  %s8 = scalar_select 0, %s7, %s5
  $region1: #{tpu_custom_call.1} parent=0
    #allocation2 [shape = 'u8[65536]{0}', space=vmem, size = 0x10000, scoped, tag = 'input window, operand 0']
    #allocation3 [shape = 's32[2]{0}', space=sflag, size = 0x8, scoped, tag = 'scoped memory for tpu_custom_call.1']
    #allocation4 [shape = 's32[2]{0}', space=sflag, size = 0x8, scoped, tag = 'scoped memory for tpu_custom_call.1']
    #allocation5 [shape = 'u8[49152]{0}', space=vmem, size = 0xc000, scoped, tag = 'input window, operand 1']
    #allocation6 [shape = 's32[2]{0}', space=sflag, size = 0x8, scoped, tag = 'scoped memory for tpu_custom_call.1']
    #allocation7 [shape = 'u8[4096]{0}', space=vmem, size = 0x1000, scoped, tag = 'input window, operand 2, single buffered']
    #allocation8 [shape = 'u8[8192]{0}', space=vmem, size = 0x2000, scoped, tag = 'input window, operand 3, single buffered']
    #allocation9 [shape = 's32[1]{0}', space=sflag, size = 0x4, scoped, tag = 'scoped memory for tpu_custom_call.1']
    #allocation10 [shape = 'u8[49152]{0}', space=vmem, size = 0xc000, scoped, tag = 'output window, operand 0']
    %9 = vsyncpa [#allocation3], 0
    %s10 = scalar_lea.sflag [#allocation3], 1
    %11 = vsyncpa %s10, 0
    %12 = vsyncpa [#allocation6], 0
    %s13 = scalar_lea.sflag [#allocation6], 1
    %14 = vsyncpa %s13, 0
    %15 = vsyncpa [#allocation9], 0
    %16 = vsyncpa [#allocation4], 0
    %s17 = scalar_lea.sflag [#allocation4], 1
    %18 = vsyncpa %s17, 0
    loop: start=0, step=1, limit=4
    $region2: #{tpu_custom_call.1} parent=1 // loop_pre_header
      _
    $region3: #{tpu_custom_call.1} parent=1 // loop_header
      %s20 = sphi 0, %s24
      %p21 = scmp.ge.s32.totalorder %s20, 4
      %s30 = sphi 0, %s32
      %s33 = sphi 0, %s30
      %s34 = sphi 0, %s33
      %s50 = sphi 0, %s34
      %s56 = sphi 0, %s58
      %s59 = sphi 0, %s56
      %s60 = sphi 0, %s59
      %s76 = sphi 0, %s60
      %s80 = sphi 0, %s80
      %s82 = sphi 0, %s80
      %s83 = sphi 0, %s82
      %s97 = sphi 0, %s83
      %s101 = sphi 0, %s101
      %s103 = sphi 0, %s101
      %s104 = sphi 0, %s103
      %s118 = sphi 0, %s104
      %s124 = sphi 0, %s126
      %s127 = sphi 0, %s124
      %s128 = sphi 0, %s127
      %s144 = sphi 0, %s128
    $region4: #{tpu_custom_call.1} parent=1 // loop_header_branch
      %23 = sbr.rel (%p21) target = $region8
    $region5: #{tpu_custom_call.1} parent=1 // loop_body
      %s25 = ssub.s32 %s20, 1
      %s26 = ssub.s32 %s20, 2
      %s27 = sadd.s32 %s20, 1
      %s28 = ssub.s32 %s20, %s27
      %p29 = scmp.eq.s32.totalorder %s28, 0
      %s31 = sadd.s32 %s30, 1
      %s32 = scalar_select %p29, %s30, %s31
      %p35 = pneg %p29
      %p36 = scmp.eq.s32.totalorder %s20, 1
      %p37 = por %p35, %p36
      %p38 = scmp.ne.s32.totalorder %s30, %s33
      %p39 = scmp.eq.s32.totalorder %s20, 0
      %p40 = por %p38, %p39
      %p41 = scmp.ne.s32.totalorder %s30, %s33
      %p42 = scmp.eq.s32.totalorder %s25, 1
      %p43 = por %p41, %p42
      %p44 = scmp.ne.s32.totalorder %s33, %s34
      %p45 = scmp.eq.s32.totalorder %s25, 0
      %p46 = por %p44, %p45
      %p47 = scmp.ne.s32.totalorder %s33, %s34
      %p48 = scmp.eq.s32.totalorder %s26, 1
      %p49 = por %p47, %p48
      %p51 = scmp.ne.s32.totalorder %s34, %s50
      %p52 = scmp.eq.s32.totalorder %s26, 0
      %p53 = por %p51, %p52
      %s54 = ssub.s32 %s20, %s27
      %p55 = scmp.eq.s32.totalorder %s54, 0
      %s57 = sadd.s32 %s56, 1
      %s58 = scalar_select %p55, %s56, %s57
      %p61 = pneg %p55
      %p62 = scmp.eq.s32.totalorder %s20, 1
      %p63 = por %p61, %p62
      %p64 = scmp.ne.s32.totalorder %s56, %s59
      %p65 = scmp.eq.s32.totalorder %s20, 0
      %p66 = por %p64, %p65
      %p67 = scmp.ne.s32.totalorder %s56, %s59
      %p68 = scmp.eq.s32.totalorder %s25, 1
      %p69 = por %p67, %p68
      %p70 = scmp.ne.s32.totalorder %s59, %s60
      %p71 = scmp.eq.s32.totalorder %s25, 0
      %p72 = por %p70, %p71
      %p73 = scmp.ne.s32.totalorder %s59, %s60
      %p74 = scmp.eq.s32.totalorder %s26, 1
      %p75 = por %p73, %p74
      %p77 = scmp.ne.s32.totalorder %s60, %s76
      %p78 = scmp.eq.s32.totalorder %s26, 0
      %p79 = por %p77, %p78
      %s81 = sadd.s32 %s80, 1
      %p84 = scmp.eq.s32.totalorder %s20, 1
      %p85 = scmp.ne.s32.totalorder %s80, %s82
      %p86 = scmp.eq.s32.totalorder %s20, 0
      %p87 = por %p85, %p86
      %p88 = scmp.ne.s32.totalorder %s80, %s82
      %p89 = scmp.eq.s32.totalorder %s25, 1
      %p90 = por %p88, %p89
      %p91 = scmp.ne.s32.totalorder %s82, %s83
      %p92 = scmp.eq.s32.totalorder %s25, 0
      %p93 = por %p91, %p92
      %p94 = scmp.ne.s32.totalorder %s82, %s83
      %p95 = scmp.eq.s32.totalorder %s26, 1
      %p96 = por %p94, %p95
      %p98 = scmp.ne.s32.totalorder %s83, %s97
      %p99 = scmp.eq.s32.totalorder %s26, 0
      %p100 = por %p98, %p99
      %s102 = sadd.s32 %s101, 1
      %p105 = scmp.eq.s32.totalorder %s20, 1
      %p106 = scmp.ne.s32.totalorder %s101, %s103
      %p107 = scmp.eq.s32.totalorder %s20, 0
      %p108 = por %p106, %p107
      %p109 = scmp.ne.s32.totalorder %s101, %s103
      %p110 = scmp.eq.s32.totalorder %s25, 1
      %p111 = por %p109, %p110
      %p112 = scmp.ne.s32.totalorder %s103, %s104
      %p113 = scmp.eq.s32.totalorder %s25, 0
      %p114 = por %p112, %p113
      %p115 = scmp.ne.s32.totalorder %s103, %s104
      %p116 = scmp.eq.s32.totalorder %s26, 1
      %p117 = por %p115, %p116
      %p119 = scmp.ne.s32.totalorder %s104, %s118
      %p120 = scmp.eq.s32.totalorder %s26, 0
      %p121 = por %p119, %p120
      %s122 = ssub.s32 %s20, %s27
      %p123 = scmp.eq.s32.totalorder %s122, 0
      %s125 = sadd.s32 %s124, 1
      %s126 = scalar_select %p123, %s124, %s125
      %p129 = pneg %p123
      %p130 = scmp.eq.s32.totalorder %s20, 1
      %p131 = por %p129, %p130
      %p132 = scmp.ne.s32.totalorder %s124, %s127
      %p133 = scmp.eq.s32.totalorder %s20, 0
      %p134 = por %p132, %p133
      %p135 = scmp.ne.s32.totalorder %s124, %s127
      %p136 = scmp.eq.s32.totalorder %s25, 1
      %p137 = por %p135, %p136
      %p138 = scmp.ne.s32.totalorder %s127, %s128
      %p139 = scmp.eq.s32.totalorder %s25, 0
      %p140 = por %p138, %p139
      %p141 = scmp.ne.s32.totalorder %s127, %s128
      %p142 = scmp.eq.s32.totalorder %s26, 1
      %p143 = por %p141, %p142
      %p145 = scmp.ne.s32.totalorder %s128, %s144
      %p146 = scmp.eq.s32.totalorder %s26, 0
      %p147 = por %p145, %p146
      %p148 = scmp.le.s32.totalorder 1, %s20
      %p149 = scmp.lt.s32.totalorder %s20, 3
      %p150 = pnand %p148, %p149
      %p151 = pneg %p150
      // Predicated region
      $region9: #{tpu_custom_call.1} parent=5 // pred_check
        _
      $region10: #{tpu_custom_call.1} parent=5 // pred_check_branch
        %153 = sbr.rel (%p150) target = $region12
      $region11: #{tpu_custom_call.1} parent=5 // pred_region
        %s154 = ssub.s32 %s20, 1
        // Predicated region
        $region13: #{tpu_custom_call.1} parent=11 // pred_check
          %p155 = pneg %p93
        $region14: #{tpu_custom_call.1} parent=11 // pred_check_branch
          %157 = sbr.rel (%p155) target = $region16
        $region15: #{tpu_custom_call.1} parent=11 // pred_region
          %159 = vsyncadd [#allocation6], 0
          %s160 = sshll.u32 %s2, 4
          %s161 = int_to_ptr.hbm [resolvable:$true] %s160
          %s162 = sshll.u32 [#allocation7], 4
          %s163 = int_to_ptr.vmem [resolvable:$true] %s162
          %168 = dma.hbm_to_vmem [thread:$0]  %s161, 128, %s163, [#allocation6], 64, 64, 4
        $region16: #{tpu_custom_call.1} parent=11 // pred_fallthru
          _
        // Predicated region
        $region17: #{tpu_custom_call.1} parent=11 // pred_check
          %p169 = pneg %p114
        $region18: #{tpu_custom_call.1} parent=11 // pred_check_branch
          %171 = sbr.rel (%p169) target = $region20
        $region19: #{tpu_custom_call.1} parent=11 // pred_region
          %173 = vsyncadd [#allocation9], 0
          %s174 = sshll.u32 %s3, 4
          %s175 = int_to_ptr.hbm [resolvable:$true] %s174
          %s176 = sshll.u32 [#allocation8], 4
          %s177 = int_to_ptr.vmem [resolvable:$true] %s176
          %182 = dma.hbm_to_vmem [thread:$0]  %s175, 256, %s177, [#allocation9], 128, 128, 8
        $region20: #{tpu_custom_call.1} parent=11 // pred_fallthru
          _
      $region12: #{tpu_custom_call.1} parent=5 // pred_fallthru
        _
      %p183 = scmp.lt.s32.totalorder %s20, 2
      // Predicated region
      $region21: #{tpu_custom_call.1} parent=5 // pred_check
        %p184 = pneg %p183
      $region22: #{tpu_custom_call.1} parent=5 // pred_check_branch
        %186 = sbr.rel (%p184) target = $region24
      $region23: #{tpu_custom_call.1} parent=5 // pred_region
        // Predicated region
        $region25: #{tpu_custom_call.1} parent=23 // pred_check
          %p187 = pneg %p40
        $region26: #{tpu_custom_call.1} parent=23 // pred_check_branch
          %189 = sbr.rel (%p187) target = $region28
        $region27: #{tpu_custom_call.1} parent=23 // pred_region
          %s190 = sand.u32 %s30, 1
          %s191 = scalar_lea.sflag [#allocation3], %s190
          %s192 = sand.u32 %s30, 1
          %s193 = smul.addr %s192, 64
          %s194 = scalar_lea.vmem [#allocation2], %s193
          %196 = vsyncadd %s191, 0
          %s197 = smul.addr %s20, 8
          %s198 = smul.addr %s197, 8
          %s199 = scalar_lea.hbm %s0, %s198
          %s200 = sshll.u32 %s199, 4
          %s201 = int_to_ptr.hbm [resolvable:$true] %s200
          %s202 = sshll.u32 %s194, 4
          %s203 = int_to_ptr.vmem [resolvable:$true] %s202
          %208 = dma.hbm_to_vmem [thread:$0]  %s201, 1024, %s203, %s191, 512, 512, 32
        $region28: #{tpu_custom_call.1} parent=23 // pred_fallthru
          _
        // Predicated region
        $region29: #{tpu_custom_call.1} parent=23 // pred_check
          %p209 = pneg %p66
        $region30: #{tpu_custom_call.1} parent=23 // pred_check_branch
          %211 = sbr.rel (%p209) target = $region32
        $region31: #{tpu_custom_call.1} parent=23 // pred_region
          %s212 = sand.u32 %s20, 1
          %s213 = scalar_lea.sflag [#allocation6], %s212
          %s214 = sand.u32 %s56, 1
          %s215 = smul.addr %s214, 48
          %s216 = scalar_lea.vmem [#allocation5], %s215
          %218 = vsyncadd %s213, 0
          %s219 = smul.addr %s20, 6
          %s220 = smul.addr %s219, 8
          %s221 = scalar_lea.hbm %s1, %s220
          %s222 = sshll.u32 %s221, 4
          %s223 = int_to_ptr.hbm [resolvable:$true] %s222
          %s224 = sshll.u32 %s216, 4
          %s225 = int_to_ptr.vmem [resolvable:$true] %s224
          %230 = dma.hbm_to_vmem [thread:$0]  %s223, 768, %s225, %s213, 384, 384, 24
        $region32: #{tpu_custom_call.1} parent=23 // pred_fallthru
          _
      $region24: #{tpu_custom_call.1} parent=5 // pred_fallthru
        _
      %p231 = scmp.le.s32.totalorder 1, %s20
      %p232 = scmp.lt.s32.totalorder %s20, 3
      %p233 = pnand %p231, %p232
      %p234 = pneg %p233
      // Predicated region
      $region33: #{tpu_custom_call.1} parent=5 // pred_check
        _
      $region34: #{tpu_custom_call.1} parent=5 // pred_check_branch
        %236 = sbr.rel (%p233) target = $region36
      $region35: #{tpu_custom_call.1} parent=5 // pred_region
        %s237 = ssub.s32 %s20, 1
        %s238 = sand.u32 %s33, 1
        %s239 = scalar_lea.sflag [#allocation3], %s238
        %s240 = sand.u32 %s33, 1
        %s241 = smul.addr %s240, 64
        %s242 = scalar_lea.vmem [#allocation2], %s241
        // Predicated region
        $region37: #{tpu_custom_call.1} parent=35 // pred_check
          %p243 = pneg %p46
        $region38: #{tpu_custom_call.1} parent=35 // pred_check_branch
          %245 = sbr.rel (%p243) target = $region40
        $region39: #{tpu_custom_call.1} parent=35 // pred_region
          %247 = dma.done %s239, 1024
        $region40: #{tpu_custom_call.1} parent=35 // pred_fallthru
          _
        %s248 = sand.u32 %s25, 1
        %s249 = scalar_lea.sflag [#allocation6], %s248
        %s250 = sand.u32 %s59, 1
        %s251 = smul.addr %s250, 48
        %s252 = scalar_lea.vmem [#allocation5], %s251
        // Predicated region
        $region41: #{tpu_custom_call.1} parent=35 // pred_check
          %p253 = pneg %p72
        $region42: #{tpu_custom_call.1} parent=35 // pred_check_branch
          %255 = sbr.rel (%p253) target = $region44
        $region43: #{tpu_custom_call.1} parent=35 // pred_region
          %257 = dma.done %s249, 768
        $region44: #{tpu_custom_call.1} parent=35 // pred_fallthru
          _
        // Predicated region
        $region45: #{tpu_custom_call.1} parent=35 // pred_check
          %p258 = pneg %p93
        $region46: #{tpu_custom_call.1} parent=35 // pred_check_branch
          %260 = sbr.rel (%p258) target = $region48
        $region47: #{tpu_custom_call.1} parent=35 // pred_region
          %262 = dma.done [#allocation6], 128
        $region48: #{tpu_custom_call.1} parent=35 // pred_fallthru
          _
        // Predicated region
        $region49: #{tpu_custom_call.1} parent=35 // pred_check
          %p263 = pneg %p114
        $region50: #{tpu_custom_call.1} parent=35 // pred_check_branch
          %265 = sbr.rel (%p263) target = $region52
        $region51: #{tpu_custom_call.1} parent=35 // pred_region
          %267 = dma.done [#allocation9], 256
        $region52: #{tpu_custom_call.1} parent=35 // pred_fallthru
          _
        %s268 = sand.u32 %s33, 1
        %s269 = scalar_lea.sflag [#allocation3], %s268
        %s270 = sand.u32 %s33, 1
        %s271 = smul.addr %s270, 64
        %s272 = scalar_lea.vmem [#allocation2], %s271
        %p273 = pneg %p46
        %p274 = pneg %p43
        %s275 = sand.u32 %s25, 1
        %s276 = scalar_lea.sflag [#allocation6], %s275
        %s277 = sand.u32 %s59, 1
        %s278 = smul.addr %s277, 48
        %s279 = scalar_lea.vmem [#allocation5], %s278
        %p280 = pneg %p72
        %p281 = pneg %p69
        %p282 = pneg %p93
        %p283 = pneg %p90
        %p284 = pneg %p114
        %p285 = pneg %p111
        %p286 = pneg %p140
        %p287 = pneg %p137
        %s288 = sand.u32 %s127, 1
        %s289 = scalar_lea.sflag [#allocation4], %s288
        %s290 = sand.u32 %s127, 1
        %s291 = smul.addr %s290, 48
        %s292 = scalar_lea.vmem [#allocation10], %s291
        %v294 = vld [vmem:[%s242] sm:$0xff]
        %v295 = vld [vmem:[%s242 + $0x8] sm:$0xff]
        %v296 = vld [vmem:[%s242 + $0x10] sm:$0xff]
        %v297 = vld [vmem:[%s242 + $0x18] sm:$0xff]
        %v298 = vld [vmem:[%s242 + $0x20] sm:$0xff]
        %v299 = vld [vmem:[%s242 + $0x28] sm:$0xff]
        %v300 = vld [vmem:[%s242 + $0x30] sm:$0xff]
        %v301 = vld [vmem:[%s242 + $0x38] sm:$0xff]
        %v302 = vpack.c.bf16 %v298, %v294
        %v303 = vpack.c.bf16 %v299, %v295
        %v304 = vpack.c.bf16 %v300, %v296
        %v305 = vpack.c.bf16 %v301, %v297
        %v306 = vld [vmem:[#allocation7] sm:$0xf]
        %v307 = vld [vmem:[#allocation7 + $0x4] sm:$0xf]
        %v310 = vunpack.c.l.b16 %v306
        %v311 = vunpack.c.l.b16 %v307
        %v312 = vpack.c.b16 %v311, %v310
        %vm313 = vcmask 130048
        %v315 = vsel %vm313, %v312, 0
        %317 = vmatpush.bf16.msra.mxu0 0
        %318 = vmatpush.bf16.msra.mxu0 0
        %319 = vmatpush.bf16.msra.mxu0 0
        %320 = vmatpush.bf16.msra.mxu0 0
        %321 = vmatpush.bf16.msra.mxu0 0
        %322 = vmatpush.bf16.msra.mxu0 0
        %323 = vmatpush.bf16.msra.mxu0 0
        %324 = vmatpush.bf16.msra.mxu0 %v302
        %325 = vmatmul.bf16.gmra.mxu0 %v315
        %v326 = vpop.f32.mrf.mxu0
        %v327 = vadd.f32 0.0, %v326
        %v328 = vpop.f32.mrf.mxu0
        %v329 = vadd.f32 0.0, %v328
        %330 = vdwg.mxu0
        %331 = vmatpush.bf16.msra.mxu0 0
        %332 = vmatpush.bf16.msra.mxu0 0
        %333 = vmatpush.bf16.msra.mxu0 0
        %334 = vmatpush.bf16.msra.mxu0 0
        %335 = vmatpush.bf16.msra.mxu0 0
        %336 = vmatpush.bf16.msra.mxu0 0
        %337 = vmatpush.bf16.msra.mxu0 0
        %338 = vmatpush.bf16.msra.mxu0 %v303
        %339 = vmatmul.bf16.gmra.mxu0 %v315
        %v340 = vpop.f32.mrf.mxu0
        %v341 = vadd.f32 0.0, %v340
        %v342 = vpop.f32.mrf.mxu0
        %v343 = vadd.f32 0.0, %v342
        %344 = vdwg.mxu0
        %345 = vmatpush.bf16.msra.mxu0 0
        %346 = vmatpush.bf16.msra.mxu0 0
        %347 = vmatpush.bf16.msra.mxu0 0
        %348 = vmatpush.bf16.msra.mxu0 0
        %349 = vmatpush.bf16.msra.mxu0 0
        %350 = vmatpush.bf16.msra.mxu0 0
        %351 = vmatpush.bf16.msra.mxu0 0
        %352 = vmatpush.bf16.msra.mxu0 %v304
        %353 = vmatmul.bf16.gmra.mxu0 %v315
        %v354 = vpop.f32.mrf.mxu0
        %v355 = vadd.f32 0.0, %v354
        %v356 = vpop.f32.mrf.mxu0
        %v357 = vadd.f32 0.0, %v356
        %358 = vdwg.mxu0
        %359 = vmatpush.bf16.msra.mxu0 0
        %360 = vmatpush.bf16.msra.mxu0 0
        %361 = vmatpush.bf16.msra.mxu0 0
        %362 = vmatpush.bf16.msra.mxu0 0
        %363 = vmatpush.bf16.msra.mxu0 0
        %364 = vmatpush.bf16.msra.mxu0 0
        %365 = vmatpush.bf16.msra.mxu0 0
        %366 = vmatpush.bf16.msra.mxu0 %v305
        %367 = vmatmul.bf16.gmra.mxu0 %v315
        %v368 = vpop.f32.mrf.mxu0
        %v369 = vadd.f32 0.0, %v368
        %v370 = vpop.f32.mrf.mxu0
        %v371 = vadd.f32 0.0, %v370
        %372 = vdwg.mxu0
        %v373 = vmax.f32 %v327, 0.0
        %v374 = vmax.f32 %v341, 0.0
        %v375 = vmax.f32 %v355, 0.0
        %v376 = vmax.f32 %v369, 0.0
        %v377 = vmax.f32 %v329, 0.0
        %v378 = vmax.f32 %v343, 0.0
        %v379 = vmax.f32 %v357, 0.0
        %v380 = vmax.f32 %v371, 0.0
        %v381 = vpack.c.bf16 %v374, %v373
        %v382 = vpack.c.bf16 %v376, %v375
        %v383 = vpack.c.bf16 %v378, %v377
        %v384 = vpack.c.bf16 %v380, %v379
        %v389 = vunpack.c.l.b16 %v381
        %v390 = vunpack.c.h.b16 %v381
        %v391 = vunpack.c.l.b16 %v382
        %v392 = vunpack.c.l.b16 %v383
        %v393 = vunpack.c.h.b16 %v383
        %v394 = vunpack.c.l.b16 %v384
        %v395 = vpack.c.b16 %v392, %v389
        %v396 = vpack.c.b16 %v393, %v390
        %v397 = vpack.c.b16 %v394, %v391
        %v401 = vunpack.c.h.b16 %v382
        %v402 = vunpack.c.h.b16 %v384
        %v403 = vpack.c.b16 %v402, %v401
        %404 = vrot.lane.b32.xlu0 %v395, 127
        %v405 = vpop.permute.xlu0 %404
        %406 = vrot.lane.b32.xlu0 %v396, 127
        %v407 = vpop.permute.xlu0 %406
        %408 = vrot.lane.b32.xlu0 %v397, 127
        %v409 = vpop.permute.xlu0 %408
        %410 = vrot.lane.b32.xlu0 %v403, 127
        %v411 = vpop.permute.xlu0 %410
        %vm412 = vcmask 1039360
        %v413 = vsel %vm412, %v405, %v407
        %v414 = vsel %vm412, %v407, %v409
        %v415 = vsel %vm412, %v409, %v411
        %419 = vrot.lane.b32.xlu0 %v395, 126
        %v420 = vpop.permute.xlu0 %419
        %421 = vrot.lane.b32.xlu0 %v396, 126
        %v422 = vpop.permute.xlu0 %421
        %423 = vrot.lane.b32.xlu0 %v397, 126
        %v424 = vpop.permute.xlu0 %423
        %425 = vrot.lane.b32.xlu0 %v403, 126
        %v426 = vpop.permute.xlu0 %425
        %vm427 = vcmask 1031168
        %v428 = vsel %vm427, %v420, %v422
        %v429 = vsel %vm427, %v422, %v424
        %v430 = vsel %vm427, %v424, %v426
        %434 = vrot.lane.b32.xlu0 %v395, 104
        %v435 = vpop.permute.xlu0 %434
        %436 = vrot.lane.b32.xlu0 %v396, 104
        %v437 = vpop.permute.xlu0 %436
        %438 = vrot.lane.b32.xlu0 %v397, 104
        %v439 = vpop.permute.xlu0 %438
        %440 = vrot.lane.b32.xlu0 %v403, 104
        %v441 = vpop.permute.xlu0 %440
        %vm442 = vcmask 850944
        %v443 = vsel %vm442, %v435, %v437
        %v444 = vsel %vm442, %v437, %v439
        %v445 = vsel %vm442, %v439, %v441
        %449 = vrot.lane.b32.xlu0 %v395, 103
        %v450 = vpop.permute.xlu0 %449
        %451 = vrot.lane.b32.xlu0 %v396, 103
        %v452 = vpop.permute.xlu0 %451
        %453 = vrot.lane.b32.xlu0 %v397, 103
        %v454 = vpop.permute.xlu0 %453
        %455 = vrot.lane.b32.xlu0 %v403, 103
        %v456 = vpop.permute.xlu0 %455
        %vm457 = vcmask 842752
        %v458 = vsel %vm457, %v450, %v452
        %v459 = vsel %vm457, %v452, %v454
        %v460 = vsel %vm457, %v454, %v456
        %464 = vrot.lane.b32.xlu0 %v395, 102
        %v465 = vpop.permute.xlu0 %464
        %466 = vrot.lane.b32.xlu0 %v396, 102
        %v467 = vpop.permute.xlu0 %466
        %468 = vrot.lane.b32.xlu0 %v397, 102
        %v469 = vpop.permute.xlu0 %468
        %470 = vrot.lane.b32.xlu0 %v403, 102
        %v471 = vpop.permute.xlu0 %470
        %vm472 = vcmask 834560
        %v473 = vsel %vm472, %v465, %v467
        %v474 = vsel %vm472, %v467, %v469
        %v475 = vsel %vm472, %v469, %v471
        %479 = vrot.lane.b32.xlu0 %v395, 80
        %v480 = vpop.permute.xlu0 %479
        %481 = vrot.lane.b32.xlu0 %v396, 80
        %v482 = vpop.permute.xlu0 %481
        %483 = vrot.lane.b32.xlu0 %v397, 80
        %v484 = vpop.permute.xlu0 %483
        %485 = vrot.lane.b32.xlu0 %v403, 80
        %v486 = vpop.permute.xlu0 %485
        %vm487 = vcmask 654336
        %v488 = vsel %vm487, %v480, %v482
        %v489 = vsel %vm487, %v482, %v484
        %v490 = vsel %vm487, %v484, %v486
        %494 = vrot.lane.b32.xlu0 %v395, 79
        %v495 = vpop.permute.xlu0 %494
        %496 = vrot.lane.b32.xlu0 %v396, 79
        %v497 = vpop.permute.xlu0 %496
        %498 = vrot.lane.b32.xlu0 %v397, 79
        %v499 = vpop.permute.xlu0 %498
        %500 = vrot.lane.b32.xlu0 %v403, 79
        %v501 = vpop.permute.xlu0 %500
        %vm502 = vcmask 646144
        %v503 = vsel %vm502, %v495, %v497
        %v504 = vsel %vm502, %v497, %v499
        %v505 = vsel %vm502, %v499, %v501
        %509 = vrot.lane.b32.xlu0 %v395, 78
        %v510 = vpop.permute.xlu0 %509
        %511 = vrot.lane.b32.xlu0 %v396, 78
        %v512 = vpop.permute.xlu0 %511
        %513 = vrot.lane.b32.xlu0 %v397, 78
        %v514 = vpop.permute.xlu0 %513
        %515 = vrot.lane.b32.xlu0 %v403, 78
        %v516 = vpop.permute.xlu0 %515
        %vm517 = vcmask 637952
        %v518 = vsel %vm517, %v510, %v512
        %v519 = vsel %vm517, %v512, %v514
        %v520 = vsel %vm517, %v514, %v516
        %v524 = vld [vmem:[#allocation8] sm:$0xff]
        %v525 = vld [vmem:[#allocation8 + $0x8] sm:$0xff]
        %v526 = vld [vmem:[%s252] sm:$0xff]
        %v527 = vld [vmem:[%s252 + $0x8] sm:$0xff]
        %v528 = vld [vmem:[%s252 + $0x10] sm:$0xff]
        %v529 = vld [vmem:[%s252 + $0x18] sm:$0xff]
        %v530 = vld [vmem:[%s252 + $0x20] sm:$0xff]
        %v531 = vld [vmem:[%s252 + $0x28] sm:$0xff]
        %v534 = vunpack.c.l.b16 %v524
        %v535 = vunpack.c.h.b16 %v524
        %v536 = vunpack.c.l.b16 %v525
        %v537 = vunpack.c.h.b16 %v525
        %v538 = vpack.c.b16 %v536, %v534
        %v539 = vpack.c.b16 %v537, %v535
        %v542 = vsel %vm313, %v539, 0
        %544 = vmatpush.bf16.msra.mxu0 %v503
        %545 = vmatpush.bf16.msra.mxu0 %v488
        %546 = vmatpush.bf16.msra.mxu0 %v473
        %547 = vmatpush.bf16.msra.mxu0 %v458
        %548 = vmatpush.bf16.msra.mxu0 %v443
        %549 = vmatpush.bf16.msra.mxu0 %v428
        %550 = vmatpush.bf16.msra.mxu0 %v413
        %551 = vmatpush.bf16.msra.mxu0 %v395
        %552 = vmatmul.bf16.gmra.mxu0 %v538
        %v553 = vpop.f32.mrf.mxu0
        %v554 = vadd.f32 %v526, %v553
        %v555 = vpop.f32.mrf.mxu0
        %v556 = vadd.f32 %v529, %v555
        %557 = vdwg.mxu0
        %558 = vmatpush.bf16.msra.mxu0 0
        %559 = vmatpush.bf16.msra.mxu0 0
        %560 = vmatpush.bf16.msra.mxu0 0
        %561 = vmatpush.bf16.msra.mxu0 0
        %562 = vmatpush.bf16.msra.mxu0 0
        %563 = vmatpush.bf16.msra.mxu0 0
        %564 = vmatpush.bf16.msra.mxu0 0
        %565 = vmatpush.bf16.msra.mxu0 %v518
        %566 = vmatmul.bf16.gmra.mxu0 %v542
        %v567 = vpop.f32.mrf.mxu0
        %v568 = vadd.f32 %v554, %v567
        %v569 = vpop.f32.mrf.mxu0
        %v570 = vadd.f32 %v556, %v569
        %571 = vdwg.mxu0
        %572 = vmatpush.bf16.msra.mxu0 %v504
        %573 = vmatpush.bf16.msra.mxu0 %v489
        %574 = vmatpush.bf16.msra.mxu0 %v474
        %575 = vmatpush.bf16.msra.mxu0 %v459
        %576 = vmatpush.bf16.msra.mxu0 %v444
        %577 = vmatpush.bf16.msra.mxu0 %v429
        %578 = vmatpush.bf16.msra.mxu0 %v414
        %579 = vmatpush.bf16.msra.mxu0 %v396
        %580 = vmatmul.bf16.gmra.mxu0 %v538
        %v581 = vpop.f32.mrf.mxu0
        %v582 = vadd.f32 %v527, %v581
        %v583 = vpop.f32.mrf.mxu0
        %v584 = vadd.f32 %v530, %v583
        %585 = vdwg.mxu0
        %586 = vmatpush.bf16.msra.mxu0 0
        %587 = vmatpush.bf16.msra.mxu0 0
        %588 = vmatpush.bf16.msra.mxu0 0
        %589 = vmatpush.bf16.msra.mxu0 0
        %590 = vmatpush.bf16.msra.mxu0 0
        %591 = vmatpush.bf16.msra.mxu0 0
        %592 = vmatpush.bf16.msra.mxu0 0
        %593 = vmatpush.bf16.msra.mxu0 %v519
        %594 = vmatmul.bf16.gmra.mxu0 %v542
        %v595 = vpop.f32.mrf.mxu0
        %v596 = vadd.f32 %v582, %v595
        %v597 = vpop.f32.mrf.mxu0
        %v598 = vadd.f32 %v584, %v597
        %599 = vdwg.mxu0
        %600 = vmatpush.bf16.msra.mxu0 %v505
        %601 = vmatpush.bf16.msra.mxu0 %v490
        %602 = vmatpush.bf16.msra.mxu0 %v475
        %603 = vmatpush.bf16.msra.mxu0 %v460
        %604 = vmatpush.bf16.msra.mxu0 %v445
        %605 = vmatpush.bf16.msra.mxu0 %v430
        %606 = vmatpush.bf16.msra.mxu0 %v415
        %607 = vmatpush.bf16.msra.mxu0 %v397
        %608 = vmatmul.bf16.gmra.mxu0 %v538
        %v609 = vpop.f32.mrf.mxu0
        %v610 = vadd.f32 %v528, %v609
        %v611 = vpop.f32.mrf.mxu0
        %v612 = vadd.f32 %v531, %v611
        %613 = vdwg.mxu0
        %614 = vmatpush.bf16.msra.mxu0 0
        %615 = vmatpush.bf16.msra.mxu0 0
        %616 = vmatpush.bf16.msra.mxu0 0
        %617 = vmatpush.bf16.msra.mxu0 0
        %618 = vmatpush.bf16.msra.mxu0 0
        %619 = vmatpush.bf16.msra.mxu0 0
        %620 = vmatpush.bf16.msra.mxu0 0
        %621 = vmatpush.bf16.msra.mxu0 %v520
        %622 = vmatmul.bf16.gmra.mxu0 %v542
        %v623 = vpop.f32.mrf.mxu0
        %v624 = vadd.f32 %v610, %v623
        %v625 = vpop.f32.mrf.mxu0
        %v626 = vadd.f32 %v612, %v625
        %627 = vdwg.mxu0
        %v628 = vmax.f32 %v568, 0.0
        %v629 = vmax.f32 %v596, 0.0
        %v630 = vmax.f32 %v624, 0.0
        %v631 = vmax.f32 %v570, 0.0
        %v632 = vmax.f32 %v598, 0.0
        %v633 = vmax.f32 %v626, 0.0
        %634 = vst [vmem:[%s292] sm:$0xff] %v628
        %635 = vst [vmem:[%s292 + $0x8] sm:$0xff] %v629
        %636 = vst [vmem:[%s292 + $0x10] sm:$0xff] %v630
        %637 = vst [vmem:[%s292 + $0x18] sm:$0xff] %v631
        %638 = vst [vmem:[%s292 + $0x20] sm:$0xff] %v632
        %639 = vst [vmem:[%s292 + $0x28] sm:$0xff] %v633
        %s640 = sand.u32 %s127, 1
        %s641 = scalar_lea.sflag [#allocation4], %s640
        %s642 = sand.u32 %s127, 1
        %s643 = smul.addr %s642, 48
        %s644 = scalar_lea.vmem [#allocation10], %s643
        // Predicated region
        $region53: #{tpu_custom_call.1} parent=35 // pred_check
          %p645 = pneg %p137
        $region54: #{tpu_custom_call.1} parent=35 // pred_check_branch
          %647 = sbr.rel (%p645) target = $region56
        $region55: #{tpu_custom_call.1} parent=35 // pred_region
          %649 = vsyncadd %s641, 0
          %s650 = smul.addr %s25, 6
          %s651 = smul.addr %s650, 8
          %s652 = scalar_lea.hbm %s4, %s651
          %s653 = sshll.u32 %s644, 4
          %s654 = int_to_ptr.vmem [resolvable:$true] %s653
          %s655 = sshll.u32 %s652, 4
          %s656 = int_to_ptr.hbm [resolvable:$true] %s655
          %661 = dma.vmem_to_hbm [thread:$0]  %s654, 768, %s656, %s641, 384, 384, 24
        $region56: #{tpu_custom_call.1} parent=35 // pred_fallthru
          _
      $region36: #{tpu_custom_call.1} parent=5 // pred_fallthru
        _
      %p662 = scmp.le.s32.totalorder 2, %s20
      // Predicated region
      $region57: #{tpu_custom_call.1} parent=5 // pred_check
        %p663 = pneg %p662
      $region58: #{tpu_custom_call.1} parent=5 // pred_check_branch
        %665 = sbr.rel (%p663) target = $region60
      $region59: #{tpu_custom_call.1} parent=5 // pred_region
        %s666 = ssub.s32 %s20, 2
        // Predicated region
        $region61: #{tpu_custom_call.1} parent=59 // pred_check
          %p667 = pneg %p143
        $region62: #{tpu_custom_call.1} parent=59 // pred_check_branch
          %669 = sbr.rel (%p667) target = $region64
        $region63: #{tpu_custom_call.1} parent=59 // pred_region
          %s670 = sand.u32 %s128, 1
          %s671 = scalar_lea.sflag [#allocation4], %s670
          %s672 = sand.u32 %s128, 1
          %s673 = smul.addr %s672, 48
          %s674 = scalar_lea.vmem [#allocation10], %s673
          %676 = dma.done %s671, 768
        $region64: #{tpu_custom_call.1} parent=59 // pred_fallthru
          _
      $region60: #{tpu_custom_call.1} parent=5 // pred_fallthru
        _
    $region6: #{tpu_custom_call.1} parent=1 // loop_footer
      %s24 = sadd.s32 1, %s20
    $region7: #{tpu_custom_call.1} parent=1 // loop_footer_branch
      %19 = sbr.rel target = $region3
    $region8: #{tpu_custom_call.1} parent=1 // loop_exit
      _
    %677 = vsyncpa [#allocation3], 1
    %s678 = scalar_lea.sflag [#allocation3], 1
    %679 = vsyncpa %s678, 1
    %680 = vsyncpa [#allocation6], 1
    %s681 = scalar_lea.sflag [#allocation6], 1
    %682 = vsyncpa %s681, 1
    %683 = vsyncpa [#allocation9], 1
    %684 = vsyncpa [#allocation4], 1
    %s685 = scalar_lea.sflag [#allocation4], 1
    %686 = vsyncpa %s685, 1

</llo_original>
